<compile_context>
chip_gen: v6e
topology: v6e:2x2x1
jax: 0.10.0
libtpu: 0.0.40
codegen_flags: <defaults>
</compile_context>

<pallas_src>
import jax
import jax.numpy as jnp
from jax import lax
from jax.experimental import pallas as pl
from jax.experimental.pallas import tpu as pltpu

_OUT_LANES = 128      # lane width of the partial-sum output block
_OUT_SUBLANES = 8     # sublane padding of the partial-sum output block


def _hungarian_mse_kernel(pred_ref, tgt_ref, out_ref):
    """One batch-lane tile.

    pred_ref, tgt_ref : (C, TB) f32 — classes on sublanes, batch on lanes.
    out_ref           : (1, 8, 128) f32 — per-lane partial sums for this tile
                        (lane k holds the sum over classes and over batch
                        columns {k, k+128, ...} of the tile), replicated over
                        the 8 sublanes so the store stays one dense block.
    """
    p = pred_ref[...]
    t = tgt_ref[...]
    C, TB = p.shape

    # Single batch-independent (C, 1) iota for the stable-rank tie break; only
    # a 1-vreg compare is redone per class below.
    row_ids = lax.broadcasted_iota(jnp.int32, (C, 1), 0)

    # rank[i, b] = #{j : x[j,b] < x[i,b]} + #{j < i : x[j,b] == x[i,b]}
    # Built from (C, TB) VPU ops only — lane-dense, no CxCxTB intermediates.
    rank_p = jnp.zeros((C, TB), jnp.float32)
    rank_t = jnp.zeros((C, TB), jnp.float32)
    # TODO(synk): for large num_classes (> ~32) switch these unrolled loops to
    # lax.fori_loop over ref rows (with a VMEM scratch for rank_t) and shrink
    # TB; at this module's small num_classes full unroll is optimal.
    for j in range(C):
        below = (row_ids > j).astype(jnp.float32)       # (C, 1) "j < i" mask
        pj = p[j:j + 1, :]                               # (1, TB)
        tj = t[j:j + 1, :]
        rank_p = rank_p + jnp.where(pj < p, 1.0, jnp.where(pj == p, below, 0.0))
        rank_t = rank_t + jnp.where(tj < t, 1.0, jnp.where(tj == t, below, 0.0))

    # Optimal 1-D assignment == match equal ranks.  Ranks are exact small
    # integers held in f32, so equality is exact.  Select-accumulate.
    reordered_t = jnp.zeros((C, TB), jnp.float32)
    for j in range(C):
        reordered_t = jnp.where(rank_t[j:j + 1, :] == rank_p,
                                t[j:j + 1, :], reordered_t)

    d = p - reordered_t
    # Per-lane partials: reduce over the class (sublane) axis, then fold TB
    # lanes down to one 128-lane vreg with lane-aligned adds (pure VALU; no
    # cross-lane XLU reduction, no scalar broadcast store).
    col = jnp.sum(d * d, axis=0, keepdims=True)          # (1, TB)
    acc = col[:, 0:_OUT_LANES]
    for k in range(1, TB // _OUT_LANES):
        acc = acc + col[:, k * _OUT_LANES:(k + 1) * _OUT_LANES]
    out_ref[...] = jnp.broadcast_to(acc.reshape(1, 1, _OUT_LANES),
                                    (1, _OUT_SUBLANES, _OUT_LANES))


def _round_up(x, m):
    return (x + m - 1) // m * m


def _pick_batch_tile(batch, num_classes):
    # Target 512-2048 lanes per grid step, capped so ~5 live (C, TB) f32
    # arrays stay inside the 64-vreg register file (C*TB <= ~8K elements),
    # and clamped to the padded batch.
    tb = (8192 // max(num_classes, 1)) // _OUT_LANES * _OUT_LANES
    tb = max(_OUT_LANES, min(2048, tb))
    tb = min(tb, _round_up(batch, _OUT_LANES))
    # Keep >= 2 grid steps for non-trivial batches so the "parallel" axis can
    # shard across v7x's two TensorCores.
    if batch > 2 * _OUT_LANES and pl.cdiv(batch, tb) < 2:
        tb = max(_OUT_LANES, _round_up(pl.cdiv(batch, 2), _OUT_LANES))
    return tb


def hungarian_mse_loss(predictions, targets):
    """predictions, targets: (batch, num_classes) float arrays. Returns scalar f32."""
    predictions = jnp.asarray(predictions, jnp.float32)
    targets = jnp.asarray(targets, jnp.float32)
    B, C = predictions.shape

    tb = _pick_batch_tile(B, C)
    num_tiles = pl.cdiv(B, tb)
    b_pad = num_tiles * tb

    # classes -> sublanes, batch -> lanes.  Single fused transpose+pad copy;
    # all-zero padded columns match each other and contribute exactly 0.
    # TODO(synk): reading contiguous (TB, C) blocks and transposing in-kernel
    # would remove this extra HBM pass, but a (TB, small-C) f32 transpose has
    # no guaranteed Mosaic lowering, so the copy stays in the wrapper.
    pred_t = jnp.pad(predictions.T, ((0, 0), (0, b_pad - B)))
    tgt_t = jnp.pad(targets.T, ((0, 0), (0, b_pad - B)))

    partials = pl.pallas_call(
        _hungarian_mse_kernel,
        out_shape=jax.ShapeDtypeStruct((num_tiles, _OUT_SUBLANES, _OUT_LANES),
                                       jnp.float32),
        grid=(num_tiles,),
        in_specs=[
            pl.BlockSpec((C, tb), lambda g: (0, g)),
            pl.BlockSpec((C, tb), lambda g: (0, g)),
        ],
        out_specs=pl.BlockSpec((1, _OUT_SUBLANES, _OUT_LANES),
                               lambda g: (g, 0, 0)),
        compiler_params=pltpu.CompilerParams(
            dimension_semantics=("parallel",),
            vmem_limit_bytes=32 * 1024 * 1024,
        ),
    )(pred_t, tgt_t)

    # mean over batch of mean over classes == total sum / (B*C)
    return jnp.sum(partials[:, 0, :]) / jnp.float32(B * C)


def _reference_loss(predictions, targets):
    # Pure-JAX reference: Hungarian on 1-D squared costs == sorted matching.
    sp = jnp.sort(predictions, axis=-1)
    st = jnp.sort(targets, axis=-1)
    return jnp.mean(jnp.mean((sp - st) ** 2, axis=-1))


if __name__ == "__main__":
    key = jax.random.PRNGKey(0)

    # Primary small case matching the module's intended shapes.
    k1, k2 = jax.random.split(key)
    batch, num_classes = 2, 8
    predictions = jax.random.normal(k1, (batch, num_classes), dtype=jnp.float32)
    targets = jax.random.normal(k2, (batch, num_classes), dtype=jnp.float32)
    loss = jax.block_until_ready(hungarian_mse_loss(predictions, targets))
    ref = jax.block_until_ready(_reference_loss(predictions, targets))
    assert jnp.allclose(loss, ref, rtol=1e-5, atol=1e-6), (loss, ref)

    # Secondary case exercising multi-tile grid, batch padding and odd C.
    k3, k4 = jax.random.split(k2)
    p2 = jax.random.normal(k3, (300, 5), dtype=jnp.float32)
    t2 = jax.random.normal(k4, (300, 5), dtype=jnp.float32)
    loss2 = jax.block_until_ready(hungarian_mse_loss(p2, t2))
    ref2 = jax.block_until_ready(_reference_loss(p2, t2))
    assert jnp.allclose(loss2, ref2, rtol=1e-5, atol=1e-5), (loss2, ref2)

    print("KERNEL_OK")
</pallas_src>

<mosaic_0001>
module attributes {stable_mosaic.version = 11 : i64} {
  func.func @_hungarian_mse_kernel(%arg0: i32, %arg1: memref<8x128xf32, #tpu.memory_space<vmem>>, %arg2: memref<8x128xf32, #tpu.memory_space<vmem>>, %arg3: memref<1x8x128xf32, #tpu.memory_space<vmem>>) attributes {dimension_semantics = [#tpu.dimension_semantics<parallel>], iteration_bounds = array<i64: 1>, scalar_prefetch = 0 : i64, scratch_operands = 0 : i64, tpu.core_type = #tpu.core_type<tc>, window_params = [{transform_indices = @transform_0, window_bounds = array<i64: 8, 128>}, {transform_indices = @transform_1, window_bounds = array<i64: 8, 128>}, {transform_indices = @transform_2, window_bounds = array<i64: 1, 8, 128>}]} {
    %c0 = arith.constant 0 : index
    %c0_0 = arith.constant 0 : index
    %0 = vector.load %arg1[%c0, %c0_0] : memref<8x128xf32, #tpu.memory_space<vmem>>, vector<8x128xf32>
    %c0_1 = arith.constant 0 : index
    %c0_2 = arith.constant 0 : index
    %1 = vector.load %arg2[%c0_1, %c0_2] : memref<8x128xf32, #tpu.memory_space<vmem>>, vector<8x128xf32>
    %2 = tpu.iota {dimensions = array<i32: 0>} : vector<8x1xi32>
    %cst = arith.constant 0.000000e+00 : f32
    %3 = vector.broadcast %cst : f32 to vector<8x128xf32>
    %cst_3 = arith.constant 0.000000e+00 : f32
    %4 = vector.broadcast %cst_3 : f32 to vector<8x128xf32>
    %c0_i32 = arith.constant 0 : i32
    %5 = vector.broadcast %c0_i32 : i32 to vector<8x1xi32>
    %6 = arith.cmpi sgt, %2, %5 : vector<8x1xi32>
    %7 = arith.extui %6 : vector<8x1xi1> to vector<8x1xi32>
    %8 = arith.sitofp %7 : vector<8x1xi32> to vector<8x1xf32>
    %9 = vector.extract_strided_slice %0 {offsets = [0, 0], sizes = [1, 128], strides = [1, 1]} : vector<8x128xf32> to vector<1x128xf32>
    %10 = vector.extract_strided_slice %1 {offsets = [0, 0], sizes = [1, 128], strides = [1, 1]} : vector<8x128xf32> to vector<1x128xf32>
    %11 = vector.broadcast %9 : vector<1x128xf32> to vector<8x128xf32>
    %12 = arith.cmpf olt, %11, %0 : vector<8x128xf32>
    %13 = vector.broadcast %9 : vector<1x128xf32> to vector<8x128xf32>
    %14 = arith.cmpf oeq, %13, %0 : vector<8x128xf32>
    %cst_4 = arith.constant 0.000000e+00 : f32
    %15 = vector.shape_cast %8 : vector<8x1xf32> to vector<8x1xf32>
    %16 = vector.broadcast %15 : vector<8x1xf32> to vector<8x128xf32>
    %17 = vector.broadcast %cst_4 : f32 to vector<8x128xf32>
    %18 = arith.select %14, %16, %17 : vector<8x128xi1>, vector<8x128xf32>
    %cst_5 = arith.constant 1.000000e+00 : f32
    %19 = vector.broadcast %cst_5 : f32 to vector<8x128xf32>
    %20 = arith.select %12, %19, %18 : vector<8x128xi1>, vector<8x128xf32>
    %21 = arith.addf %3, %20 : vector<8x128xf32>
    %22 = vector.broadcast %10 : vector<1x128xf32> to vector<8x128xf32>
    %23 = arith.cmpf olt, %22, %1 : vector<8x128xf32>
    %24 = vector.broadcast %10 : vector<1x128xf32> to vector<8x128xf32>
    %25 = arith.cmpf oeq, %24, %1 : vector<8x128xf32>
    %cst_6 = arith.constant 0.000000e+00 : f32
    %26 = vector.shape_cast %8 : vector<8x1xf32> to vector<8x1xf32>
    %27 = vector.broadcast %26 : vector<8x1xf32> to vector<8x128xf32>
    %28 = vector.broadcast %cst_6 : f32 to vector<8x128xf32>
    %29 = arith.select %25, %27, %28 : vector<8x128xi1>, vector<8x128xf32>
    %cst_7 = arith.constant 1.000000e+00 : f32
    %30 = vector.broadcast %cst_7 : f32 to vector<8x128xf32>
    %31 = arith.select %23, %30, %29 : vector<8x128xi1>, vector<8x128xf32>
    %32 = arith.addf %4, %31 : vector<8x128xf32>
    %c1_i32 = arith.constant 1 : i32
    %33 = vector.broadcast %c1_i32 : i32 to vector<8x1xi32>
    %34 = arith.cmpi sgt, %2, %33 : vector<8x1xi32>
    %35 = arith.extui %34 : vector<8x1xi1> to vector<8x1xi32>
    %36 = arith.sitofp %35 : vector<8x1xi32> to vector<8x1xf32>
    %37 = vector.extract_strided_slice %0 {offsets = [1, 0], sizes = [1, 128], strides = [1, 1]} : vector<8x128xf32> to vector<1x128xf32>
    %38 = vector.extract_strided_slice %1 {offsets = [1, 0], sizes = [1, 128], strides = [1, 1]} : vector<8x128xf32> to vector<1x128xf32>
    %39 = vector.broadcast %37 : vector<1x128xf32> to vector<8x128xf32>
    %40 = arith.cmpf olt, %39, %0 : vector<8x128xf32>
    %41 = vector.broadcast %37 : vector<1x128xf32> to vector<8x128xf32>
    %42 = arith.cmpf oeq, %41, %0 : vector<8x128xf32>
    %cst_8 = arith.constant 0.000000e+00 : f32
    %43 = vector.shape_cast %36 : vector<8x1xf32> to vector<8x1xf32>
    %44 = vector.broadcast %43 : vector<8x1xf32> to vector<8x128xf32>
    %45 = vector.broadcast %cst_8 : f32 to vector<8x128xf32>
    %46 = arith.select %42, %44, %45 : vector<8x128xi1>, vector<8x128xf32>
    %cst_9 = arith.constant 1.000000e+00 : f32
    %47 = vector.broadcast %cst_9 : f32 to vector<8x128xf32>
    %48 = arith.select %40, %47, %46 : vector<8x128xi1>, vector<8x128xf32>
    %49 = arith.addf %21, %48 : vector<8x128xf32>
    %50 = vector.broadcast %38 : vector<1x128xf32> to vector<8x128xf32>
    %51 = arith.cmpf olt, %50, %1 : vector<8x128xf32>
    %52 = vector.broadcast %38 : vector<1x128xf32> to vector<8x128xf32>
    %53 = arith.cmpf oeq, %52, %1 : vector<8x128xf32>
    %cst_10 = arith.constant 0.000000e+00 : f32
    %54 = vector.shape_cast %36 : vector<8x1xf32> to vector<8x1xf32>
    %55 = vector.broadcast %54 : vector<8x1xf32> to vector<8x128xf32>
    %56 = vector.broadcast %cst_10 : f32 to vector<8x128xf32>
    %57 = arith.select %53, %55, %56 : vector<8x128xi1>, vector<8x128xf32>
    %cst_11 = arith.constant 1.000000e+00 : f32
    %58 = vector.broadcast %cst_11 : f32 to vector<8x128xf32>
    %59 = arith.select %51, %58, %57 : vector<8x128xi1>, vector<8x128xf32>
    %60 = arith.addf %32, %59 : vector<8x128xf32>
    %c2_i32 = arith.constant 2 : i32
    %61 = vector.broadcast %c2_i32 : i32 to vector<8x1xi32>
    %62 = arith.cmpi sgt, %2, %61 : vector<8x1xi32>
    %63 = arith.extui %62 : vector<8x1xi1> to vector<8x1xi32>
    %64 = arith.sitofp %63 : vector<8x1xi32> to vector<8x1xf32>
    %65 = vector.extract_strided_slice %0 {offsets = [2, 0], sizes = [1, 128], strides = [1, 1]} : vector<8x128xf32> to vector<1x128xf32>
    %66 = vector.extract_strided_slice %1 {offsets = [2, 0], sizes = [1, 128], strides = [1, 1]} : vector<8x128xf32> to vector<1x128xf32>
    %67 = vector.broadcast %65 : vector<1x128xf32> to vector<8x128xf32>
    %68 = arith.cmpf olt, %67, %0 : vector<8x128xf32>
    %69 = vector.broadcast %65 : vector<1x128xf32> to vector<8x128xf32>
    %70 = arith.cmpf oeq, %69, %0 : vector<8x128xf32>
    %cst_12 = arith.constant 0.000000e+00 : f32
    %71 = vector.shape_cast %64 : vector<8x1xf32> to vector<8x1xf32>
    %72 = vector.broadcast %71 : vector<8x1xf32> to vector<8x128xf32>
    %73 = vector.broadcast %cst_12 : f32 to vector<8x128xf32>
    %74 = arith.select %70, %72, %73 : vector<8x128xi1>, vector<8x128xf32>
    %cst_13 = arith.constant 1.000000e+00 : f32
    %75 = vector.broadcast %cst_13 : f32 to vector<8x128xf32>
    %76 = arith.select %68, %75, %74 : vector<8x128xi1>, vector<8x128xf32>
    %77 = arith.addf %49, %76 : vector<8x128xf32>
    %78 = vector.broadcast %66 : vector<1x128xf32> to vector<8x128xf32>
    %79 = arith.cmpf olt, %78, %1 : vector<8x128xf32>
    %80 = vector.broadcast %66 : vector<1x128xf32> to vector<8x128xf32>
    %81 = arith.cmpf oeq, %80, %1 : vector<8x128xf32>
    %cst_14 = arith.constant 0.000000e+00 : f32
    %82 = vector.shape_cast %64 : vector<8x1xf32> to vector<8x1xf32>
    %83 = vector.broadcast %82 : vector<8x1xf32> to vector<8x128xf32>
    %84 = vector.broadcast %cst_14 : f32 to vector<8x128xf32>
    %85 = arith.select %81, %83, %84 : vector<8x128xi1>, vector<8x128xf32>
    %cst_15 = arith.constant 1.000000e+00 : f32
    %86 = vector.broadcast %cst_15 : f32 to vector<8x128xf32>
    %87 = arith.select %79, %86, %85 : vector<8x128xi1>, vector<8x128xf32>
    %88 = arith.addf %60, %87 : vector<8x128xf32>
    %c3_i32 = arith.constant 3 : i32
    %89 = vector.broadcast %c3_i32 : i32 to vector<8x1xi32>
    %90 = arith.cmpi sgt, %2, %89 : vector<8x1xi32>
    %91 = arith.extui %90 : vector<8x1xi1> to vector<8x1xi32>
    %92 = arith.sitofp %91 : vector<8x1xi32> to vector<8x1xf32>
    %93 = vector.extract_strided_slice %0 {offsets = [3, 0], sizes = [1, 128], strides = [1, 1]} : vector<8x128xf32> to vector<1x128xf32>
    %94 = vector.extract_strided_slice %1 {offsets = [3, 0], sizes = [1, 128], strides = [1, 1]} : vector<8x128xf32> to vector<1x128xf32>
    %95 = vector.broadcast %93 : vector<1x128xf32> to vector<8x128xf32>
    %96 = arith.cmpf olt, %95, %0 : vector<8x128xf32>
    %97 = vector.broadcast %93 : vector<1x128xf32> to vector<8x128xf32>
    %98 = arith.cmpf oeq, %97, %0 : vector<8x128xf32>
    %cst_16 = arith.constant 0.000000e+00 : f32
    %99 = vector.shape_cast %92 : vector<8x1xf32> to vector<8x1xf32>
    %100 = vector.broadcast %99 : vector<8x1xf32> to vector<8x128xf32>
    %101 = vector.broadcast %cst_16 : f32 to vector<8x128xf32>
    %102 = arith.select %98, %100, %101 : vector<8x128xi1>, vector<8x128xf32>
    %cst_17 = arith.constant 1.000000e+00 : f32
    %103 = vector.broadcast %cst_17 : f32 to vector<8x128xf32>
    %104 = arith.select %96, %103, %102 : vector<8x128xi1>, vector<8x128xf32>
    %105 = arith.addf %77, %104 : vector<8x128xf32>
    %106 = vector.broadcast %94 : vector<1x128xf32> to vector<8x128xf32>
    %107 = arith.cmpf olt, %106, %1 : vector<8x128xf32>
    %108 = vector.broadcast %94 : vector<1x128xf32> to vector<8x128xf32>
    %109 = arith.cmpf oeq, %108, %1 : vector<8x128xf32>
    %cst_18 = arith.constant 0.000000e+00 : f32
    %110 = vector.shape_cast %92 : vector<8x1xf32> to vector<8x1xf32>
    %111 = vector.broadcast %110 : vector<8x1xf32> to vector<8x128xf32>
    %112 = vector.broadcast %cst_18 : f32 to vector<8x128xf32>
    %113 = arith.select %109, %111, %112 : vector<8x128xi1>, vector<8x128xf32>
    %cst_19 = arith.constant 1.000000e+00 : f32
    %114 = vector.broadcast %cst_19 : f32 to vector<8x128xf32>
    %115 = arith.select %107, %114, %113 : vector<8x128xi1>, vector<8x128xf32>
    %116 = arith.addf %88, %115 : vector<8x128xf32>
    %c4_i32 = arith.constant 4 : i32
    %117 = vector.broadcast %c4_i32 : i32 to vector<8x1xi32>
    %118 = arith.cmpi sgt, %2, %117 : vector<8x1xi32>
    %119 = arith.extui %118 : vector<8x1xi1> to vector<8x1xi32>
    %120 = arith.sitofp %119 : vector<8x1xi32> to vector<8x1xf32>
    %121 = vector.extract_strided_slice %0 {offsets = [4, 0], sizes = [1, 128], strides = [1, 1]} : vector<8x128xf32> to vector<1x128xf32>
    %122 = vector.extract_strided_slice %1 {offsets = [4, 0], sizes = [1, 128], strides = [1, 1]} : vector<8x128xf32> to vector<1x128xf32>
    %123 = vector.broadcast %121 : vector<1x128xf32> to vector<8x128xf32>
    %124 = arith.cmpf olt, %123, %0 : vector<8x128xf32>
    %125 = vector.broadcast %121 : vector<1x128xf32> to vector<8x128xf32>
    %126 = arith.cmpf oeq, %125, %0 : vector<8x128xf32>
    %cst_20 = arith.constant 0.000000e+00 : f32
    %127 = vector.shape_cast %120 : vector<8x1xf32> to vector<8x1xf32>
    %128 = vector.broadcast %127 : vector<8x1xf32> to vector<8x128xf32>
    %129 = vector.broadcast %cst_20 : f32 to vector<8x128xf32>
    %130 = arith.select %126, %128, %129 : vector<8x128xi1>, vector<8x128xf32>
    %cst_21 = arith.constant 1.000000e+00 : f32
    %131 = vector.broadcast %cst_21 : f32 to vector<8x128xf32>
    %132 = arith.select %124, %131, %130 : vector<8x128xi1>, vector<8x128xf32>
    %133 = arith.addf %105, %132 : vector<8x128xf32>
    %134 = vector.broadcast %122 : vector<1x128xf32> to vector<8x128xf32>
    %135 = arith.cmpf olt, %134, %1 : vector<8x128xf32>
    %136 = vector.broadcast %122 : vector<1x128xf32> to vector<8x128xf32>
    %137 = arith.cmpf oeq, %136, %1 : vector<8x128xf32>
    %cst_22 = arith.constant 0.000000e+00 : f32
    %138 = vector.shape_cast %120 : vector<8x1xf32> to vector<8x1xf32>
    %139 = vector.broadcast %138 : vector<8x1xf32> to vector<8x128xf32>
    %140 = vector.broadcast %cst_22 : f32 to vector<8x128xf32>
    %141 = arith.select %137, %139, %140 : vector<8x128xi1>, vector<8x128xf32>
    %cst_23 = arith.constant 1.000000e+00 : f32
    %142 = vector.broadcast %cst_23 : f32 to vector<8x128xf32>
    %143 = arith.select %135, %142, %141 : vector<8x128xi1>, vector<8x128xf32>
    %144 = arith.addf %116, %143 : vector<8x128xf32>
    %c5_i32 = arith.constant 5 : i32
    %145 = vector.broadcast %c5_i32 : i32 to vector<8x1xi32>
    %146 = arith.cmpi sgt, %2, %145 : vector<8x1xi32>
    %147 = arith.extui %146 : vector<8x1xi1> to vector<8x1xi32>
    %148 = arith.sitofp %147 : vector<8x1xi32> to vector<8x1xf32>
    %149 = vector.extract_strided_slice %0 {offsets = [5, 0], sizes = [1, 128], strides = [1, 1]} : vector<8x128xf32> to vector<1x128xf32>
    %150 = vector.extract_strided_slice %1 {offsets = [5, 0], sizes = [1, 128], strides = [1, 1]} : vector<8x128xf32> to vector<1x128xf32>
    %151 = vector.broadcast %149 : vector<1x128xf32> to vector<8x128xf32>
    %152 = arith.cmpf olt, %151, %0 : vector<8x128xf32>
    %153 = vector.broadcast %149 : vector<1x128xf32> to vector<8x128xf32>
    %154 = arith.cmpf oeq, %153, %0 : vector<8x128xf32>
    %cst_24 = arith.constant 0.000000e+00 : f32
    %155 = vector.shape_cast %148 : vector<8x1xf32> to vector<8x1xf32>
    %156 = vector.broadcast %155 : vector<8x1xf32> to vector<8x128xf32>
    %157 = vector.broadcast %cst_24 : f32 to vector<8x128xf32>
    %158 = arith.select %154, %156, %157 : vector<8x128xi1>, vector<8x128xf32>
    %cst_25 = arith.constant 1.000000e+00 : f32
    %159 = vector.broadcast %cst_25 : f32 to vector<8x128xf32>
    %160 = arith.select %152, %159, %158 : vector<8x128xi1>, vector<8x128xf32>
    %161 = arith.addf %133, %160 : vector<8x128xf32>
    %162 = vector.broadcast %150 : vector<1x128xf32> to vector<8x128xf32>
    %163 = arith.cmpf olt, %162, %1 : vector<8x128xf32>
    %164 = vector.broadcast %150 : vector<1x128xf32> to vector<8x128xf32>
    %165 = arith.cmpf oeq, %164, %1 : vector<8x128xf32>
    %cst_26 = arith.constant 0.000000e+00 : f32
    %166 = vector.shape_cast %148 : vector<8x1xf32> to vector<8x1xf32>
    %167 = vector.broadcast %166 : vector<8x1xf32> to vector<8x128xf32>
    %168 = vector.broadcast %cst_26 : f32 to vector<8x128xf32>
    %169 = arith.select %165, %167, %168 : vector<8x128xi1>, vector<8x128xf32>
    %cst_27 = arith.constant 1.000000e+00 : f32
    %170 = vector.broadcast %cst_27 : f32 to vector<8x128xf32>
    %171 = arith.select %163, %170, %169 : vector<8x128xi1>, vector<8x128xf32>
    %172 = arith.addf %144, %171 : vector<8x128xf32>
    %c6_i32 = arith.constant 6 : i32
    %173 = vector.broadcast %c6_i32 : i32 to vector<8x1xi32>
    %174 = arith.cmpi sgt, %2, %173 : vector<8x1xi32>
    %175 = arith.extui %174 : vector<8x1xi1> to vector<8x1xi32>
    %176 = arith.sitofp %175 : vector<8x1xi32> to vector<8x1xf32>
    %177 = vector.extract_strided_slice %0 {offsets = [6, 0], sizes = [1, 128], strides = [1, 1]} : vector<8x128xf32> to vector<1x128xf32>
    %178 = vector.extract_strided_slice %1 {offsets = [6, 0], sizes = [1, 128], strides = [1, 1]} : vector<8x128xf32> to vector<1x128xf32>
    %179 = vector.broadcast %177 : vector<1x128xf32> to vector<8x128xf32>
    %180 = arith.cmpf olt, %179, %0 : vector<8x128xf32>
    %181 = vector.broadcast %177 : vector<1x128xf32> to vector<8x128xf32>
    %182 = arith.cmpf oeq, %181, %0 : vector<8x128xf32>
    %cst_28 = arith.constant 0.000000e+00 : f32
    %183 = vector.shape_cast %176 : vector<8x1xf32> to vector<8x1xf32>
    %184 = vector.broadcast %183 : vector<8x1xf32> to vector<8x128xf32>
    %185 = vector.broadcast %cst_28 : f32 to vector<8x128xf32>
    %186 = arith.select %182, %184, %185 : vector<8x128xi1>, vector<8x128xf32>
    %cst_29 = arith.constant 1.000000e+00 : f32
    %187 = vector.broadcast %cst_29 : f32 to vector<8x128xf32>
    %188 = arith.select %180, %187, %186 : vector<8x128xi1>, vector<8x128xf32>
    %189 = arith.addf %161, %188 : vector<8x128xf32>
    %190 = vector.broadcast %178 : vector<1x128xf32> to vector<8x128xf32>
    %191 = arith.cmpf olt, %190, %1 : vector<8x128xf32>
    %192 = vector.broadcast %178 : vector<1x128xf32> to vector<8x128xf32>
    %193 = arith.cmpf oeq, %192, %1 : vector<8x128xf32>
    %cst_30 = arith.constant 0.000000e+00 : f32
    %194 = vector.shape_cast %176 : vector<8x1xf32> to vector<8x1xf32>
    %195 = vector.broadcast %194 : vector<8x1xf32> to vector<8x128xf32>
    %196 = vector.broadcast %cst_30 : f32 to vector<8x128xf32>
    %197 = arith.select %193, %195, %196 : vector<8x128xi1>, vector<8x128xf32>
    %cst_31 = arith.constant 1.000000e+00 : f32
    %198 = vector.broadcast %cst_31 : f32 to vector<8x128xf32>
    %199 = arith.select %191, %198, %197 : vector<8x128xi1>, vector<8x128xf32>
    %200 = arith.addf %172, %199 : vector<8x128xf32>
    %c7_i32 = arith.constant 7 : i32
    %201 = vector.broadcast %c7_i32 : i32 to vector<8x1xi32>
    %202 = arith.cmpi sgt, %2, %201 : vector<8x1xi32>
    %203 = arith.extui %202 : vector<8x1xi1> to vector<8x1xi32>
    %204 = arith.sitofp %203 : vector<8x1xi32> to vector<8x1xf32>
    %205 = vector.extract_strided_slice %0 {offsets = [7, 0], sizes = [1, 128], strides = [1, 1]} : vector<8x128xf32> to vector<1x128xf32>
    %206 = vector.extract_strided_slice %1 {offsets = [7, 0], sizes = [1, 128], strides = [1, 1]} : vector<8x128xf32> to vector<1x128xf32>
    %207 = vector.broadcast %205 : vector<1x128xf32> to vector<8x128xf32>
    %208 = arith.cmpf olt, %207, %0 : vector<8x128xf32>
    %209 = vector.broadcast %205 : vector<1x128xf32> to vector<8x128xf32>
    %210 = arith.cmpf oeq, %209, %0 : vector<8x128xf32>
    %cst_32 = arith.constant 0.000000e+00 : f32
    %211 = vector.shape_cast %204 : vector<8x1xf32> to vector<8x1xf32>
    %212 = vector.broadcast %211 : vector<8x1xf32> to vector<8x128xf32>
    %213 = vector.broadcast %cst_32 : f32 to vector<8x128xf32>
    %214 = arith.select %210, %212, %213 : vector<8x128xi1>, vector<8x128xf32>
    %cst_33 = arith.constant 1.000000e+00 : f32
    %215 = vector.broadcast %cst_33 : f32 to vector<8x128xf32>
    %216 = arith.select %208, %215, %214 : vector<8x128xi1>, vector<8x128xf32>
    %217 = arith.addf %189, %216 : vector<8x128xf32>
    %218 = vector.broadcast %206 : vector<1x128xf32> to vector<8x128xf32>
    %219 = arith.cmpf olt, %218, %1 : vector<8x128xf32>
    %220 = vector.broadcast %206 : vector<1x128xf32> to vector<8x128xf32>
    %221 = arith.cmpf oeq, %220, %1 : vector<8x128xf32>
    %cst_34 = arith.constant 0.000000e+00 : f32
    %222 = vector.shape_cast %204 : vector<8x1xf32> to vector<8x1xf32>
    %223 = vector.broadcast %222 : vector<8x1xf32> to vector<8x128xf32>
    %224 = vector.broadcast %cst_34 : f32 to vector<8x128xf32>
    %225 = arith.select %221, %223, %224 : vector<8x128xi1>, vector<8x128xf32>
    %cst_35 = arith.constant 1.000000e+00 : f32
    %226 = vector.broadcast %cst_35 : f32 to vector<8x128xf32>
    %227 = arith.select %219, %226, %225 : vector<8x128xi1>, vector<8x128xf32>
    %228 = arith.addf %200, %227 : vector<8x128xf32>
    %cst_36 = arith.constant 0.000000e+00 : f32
    %229 = vector.broadcast %cst_36 : f32 to vector<8x128xf32>
    %230 = vector.extract_strided_slice %228 {offsets = [0, 0], sizes = [1, 128], strides = [1, 1]} : vector<8x128xf32> to vector<1x128xf32>
    %231 = vector.broadcast %230 : vector<1x128xf32> to vector<8x128xf32>
    %232 = arith.cmpf oeq, %231, %217 : vector<8x128xf32>
    %233 = vector.extract_strided_slice %1 {offsets = [0, 0], sizes = [1, 128], strides = [1, 1]} : vector<8x128xf32> to vector<1x128xf32>
    %234 = vector.shape_cast %233 : vector<1x128xf32> to vector<1x128xf32>
    %235 = vector.broadcast %234 : vector<1x128xf32> to vector<8x128xf32>
    %236 = arith.select %232, %235, %229 : vector<8x128xi1>, vector<8x128xf32>
    %237 = vector.extract_strided_slice %228 {offsets = [1, 0], sizes = [1, 128], strides = [1, 1]} : vector<8x128xf32> to vector<1x128xf32>
    %238 = vector.broadcast %237 : vector<1x128xf32> to vector<8x128xf32>
    %239 = arith.cmpf oeq, %238, %217 : vector<8x128xf32>
    %240 = vector.extract_strided_slice %1 {offsets = [1, 0], sizes = [1, 128], strides = [1, 1]} : vector<8x128xf32> to vector<1x128xf32>
    %241 = vector.shape_cast %240 : vector<1x128xf32> to vector<1x128xf32>
    %242 = vector.broadcast %241 : vector<1x128xf32> to vector<8x128xf32>
    %243 = arith.select %239, %242, %236 : vector<8x128xi1>, vector<8x128xf32>
    %244 = vector.extract_strided_slice %228 {offsets = [2, 0], sizes = [1, 128], strides = [1, 1]} : vector<8x128xf32> to vector<1x128xf32>
    %245 = vector.broadcast %244 : vector<1x128xf32> to vector<8x128xf32>
    %246 = arith.cmpf oeq, %245, %217 : vector<8x128xf32>
    %247 = vector.extract_strided_slice %1 {offsets = [2, 0], sizes = [1, 128], strides = [1, 1]} : vector<8x128xf32> to vector<1x128xf32>
    %248 = vector.shape_cast %247 : vector<1x128xf32> to vector<1x128xf32>
    %249 = vector.broadcast %248 : vector<1x128xf32> to vector<8x128xf32>
    %250 = arith.select %246, %249, %243 : vector<8x128xi1>, vector<8x128xf32>
    %251 = vector.extract_strided_slice %228 {offsets = [3, 0], sizes = [1, 128], strides = [1, 1]} : vector<8x128xf32> to vector<1x128xf32>
    %252 = vector.broadcast %251 : vector<1x128xf32> to vector<8x128xf32>
    %253 = arith.cmpf oeq, %252, %217 : vector<8x128xf32>
    %254 = vector.extract_strided_slice %1 {offsets = [3, 0], sizes = [1, 128], strides = [1, 1]} : vector<8x128xf32> to vector<1x128xf32>
    %255 = vector.shape_cast %254 : vector<1x128xf32> to vector<1x128xf32>
    %256 = vector.broadcast %255 : vector<1x128xf32> to vector<8x128xf32>
    %257 = arith.select %253, %256, %250 : vector<8x128xi1>, vector<8x128xf32>
    %258 = vector.extract_strided_slice %228 {offsets = [4, 0], sizes = [1, 128], strides = [1, 1]} : vector<8x128xf32> to vector<1x128xf32>
    %259 = vector.broadcast %258 : vector<1x128xf32> to vector<8x128xf32>
    %260 = arith.cmpf oeq, %259, %217 : vector<8x128xf32>
    %261 = vector.extract_strided_slice %1 {offsets = [4, 0], sizes = [1, 128], strides = [1, 1]} : vector<8x128xf32> to vector<1x128xf32>
    %262 = vector.shape_cast %261 : vector<1x128xf32> to vector<1x128xf32>
    %263 = vector.broadcast %262 : vector<1x128xf32> to vector<8x128xf32>
    %264 = arith.select %260, %263, %257 : vector<8x128xi1>, vector<8x128xf32>
    %265 = vector.extract_strided_slice %228 {offsets = [5, 0], sizes = [1, 128], strides = [1, 1]} : vector<8x128xf32> to vector<1x128xf32>
    %266 = vector.broadcast %265 : vector<1x128xf32> to vector<8x128xf32>
    %267 = arith.cmpf oeq, %266, %217 : vector<8x128xf32>
    %268 = vector.extract_strided_slice %1 {offsets = [5, 0], sizes = [1, 128], strides = [1, 1]} : vector<8x128xf32> to vector<1x128xf32>
    %269 = vector.shape_cast %268 : vector<1x128xf32> to vector<1x128xf32>
    %270 = vector.broadcast %269 : vector<1x128xf32> to vector<8x128xf32>
    %271 = arith.select %267, %270, %264 : vector<8x128xi1>, vector<8x128xf32>
    %272 = vector.extract_strided_slice %228 {offsets = [6, 0], sizes = [1, 128], strides = [1, 1]} : vector<8x128xf32> to vector<1x128xf32>
    %273 = vector.broadcast %272 : vector<1x128xf32> to vector<8x128xf32>
    %274 = arith.cmpf oeq, %273, %217 : vector<8x128xf32>
    %275 = vector.extract_strided_slice %1 {offsets = [6, 0], sizes = [1, 128], strides = [1, 1]} : vector<8x128xf32> to vector<1x128xf32>
    %276 = vector.shape_cast %275 : vector<1x128xf32> to vector<1x128xf32>
    %277 = vector.broadcast %276 : vector<1x128xf32> to vector<8x128xf32>
    %278 = arith.select %274, %277, %271 : vector<8x128xi1>, vector<8x128xf32>
    %279 = vector.extract_strided_slice %228 {offsets = [7, 0], sizes = [1, 128], strides = [1, 1]} : vector<8x128xf32> to vector<1x128xf32>
    %280 = vector.broadcast %279 : vector<1x128xf32> to vector<8x128xf32>
    %281 = arith.cmpf oeq, %280, %217 : vector<8x128xf32>
    %282 = vector.extract_strided_slice %1 {offsets = [7, 0], sizes = [1, 128], strides = [1, 1]} : vector<8x128xf32> to vector<1x128xf32>
    %283 = vector.shape_cast %282 : vector<1x128xf32> to vector<1x128xf32>
    %284 = vector.broadcast %283 : vector<1x128xf32> to vector<8x128xf32>
    %285 = arith.select %281, %284, %278 : vector<8x128xi1>, vector<8x128xf32>
    %286 = arith.subf %0, %285 : vector<8x128xf32>
    %287 = arith.mulf %286, %286 : vector<8x128xf32>
    %cst_37 = arith.constant dense<0.000000e+00> : vector<128xf32>
    %288 = vector.multi_reduction <add>, %287, %cst_37 [0] : vector<8x128xf32> to vector<128xf32>
    %289 = vector.shape_cast %288 : vector<128xf32> to vector<1x128xf32>
    %290 = vector.shape_cast %289 : vector<1x128xf32> to vector<1x1x128xf32>
    %291 = vector.shape_cast %290 : vector<1x1x128xf32> to vector<1x1x128xf32>
    %292 = vector.broadcast %291 : vector<1x1x128xf32> to vector<1x8x128xf32>
    %c0_38 = arith.constant 0 : index
    %c0_39 = arith.constant 0 : index
    %c0_40 = arith.constant 0 : index
    %293 = vector.load %arg3[%c0_38, %c0_39, %c0_40] : memref<1x8x128xf32, #tpu.memory_space<vmem>>, vector<1x8x128xf32>
    tpu.vector_store %arg3[%c0_38, %c0_39, %c0_40], %292 {strides = array<i32>} : memref<1x8x128xf32, #tpu.memory_space<vmem>>, vector<1x8x128xf32>,
    return
  }
  func.func @transform_0(%arg0: i32) -> (i32, i32) {
    %c0_i32 = arith.constant 0 : i32
    %c0_i32_0 = arith.constant 0 : i32
    return %c0_i32, %arg0 : i32, i32
  }
  func.func @transform_1(%arg0: i32) -> (i32, i32) {
    %c0_i32 = arith.constant 0 : i32
    %c0_i32_0 = arith.constant 0 : i32
    return %c0_i32, %arg0 : i32, i32
  }
  func.func @transform_2(%arg0: i32) -> (i32, i32, i32) {
    %c0_i32 = arith.constant 0 : i32
    %c0_i32_0 = arith.constant 0 : i32
    %c0_i32_1 = arith.constant 0 : i32
    return %arg0, %c0_i32, %c0_i32_0 : i32, i32, i32
  }
}

</mosaic_0001>

<llo_original>
// kernel: tpu_custom_call.1
$region0: #{tpu_custom_call.1}
  #allocation0 [shape = 'u32[]', space=smem, size = 0x4, offset = 0x4, fixed_abs, tag = 'smem constant byte address 0x4 - core index']
  #allocation1 [shape = 'u32[144,128]{1,0:T(1,128)}', space=vmem, size = 0x12000, scoped, tag = 'internal scratch']
  %s0 = inlined_call_operand.hbm [shape: f32[8,128], index: 0, kind: input, shape index: {}]
  %s1 = inlined_call_operand.hbm [shape: f32[8,128], index: 1, kind: input, shape index: {}]
  %s2 = inlined_call_operand.hbm [shape: f32[1,8,128], index: 2, kind: output, shape index: {}]
  %s3 = sld [smem:[#allocation0]]
  $region26: #{tpu_custom_call.1} parent=0
    _
  %s5 = ssub.s32 1, %s3
  %s6 = scalar_select 0, %s5, %s3
  $region1: #{tpu_custom_call.1} parent=0
    #allocation2 [shape = 'u8[4096]{0}', space=vmem, size = 0x1000, scoped, tag = 'input window, operand 0, single buffered']
    #allocation3 [shape = 's32[1]{0}', space=sflag, size = 0x4, scoped, tag = 'scoped memory for tpu_custom_call.1']
    #allocation4 [shape = 's32[1]{0}', space=sflag, size = 0x4, scoped, tag = 'scoped memory for tpu_custom_call.1']
    #allocation5 [shape = 'u8[4096]{0}', space=vmem, size = 0x1000, scoped, tag = 'input window, operand 1, single buffered']
    #allocation6 [shape = 's32[1]{0}', space=sflag, size = 0x4, scoped, tag = 'scoped memory for tpu_custom_call.1']
    #allocation7 [shape = 'u8[4096]{0}', space=vmem, size = 0x1000, scoped, tag = 'output window, operand 0, single buffered']
    %7 = vsyncpa [#allocation3], 0
    %8 = vsyncpa [#allocation6], 0
    %9 = vsyncpa [#allocation4], 0
    // Predicated region
    $region2: #{tpu_custom_call.1} parent=1 // pred_check
      _
    $region3: #{tpu_custom_call.1} parent=1 // pred_check_branch
      %11 = sbr.rel (0) target = $region5
    $region4: #{tpu_custom_call.1} parent=1 // pred_region
      %s13 = ssub.s32 128, 128
      %14 = vsyncadd [#allocation3], %s13
      %s16 = sshll.u32 [#allocation2], 4
      %s17 = int_to_ptr.vmem [resolvable:$true] %s16
      %19 = dma.hbm_to_vmem [thread:$0]  %s0, 128, %s17, [#allocation3]
    $region5: #{tpu_custom_call.1} parent=1 // pred_fallthru
      _
    // Predicated region
    $region6: #{tpu_custom_call.1} parent=1 // pred_check
      _
    $region7: #{tpu_custom_call.1} parent=1 // pred_check_branch
      %21 = sbr.rel (0) target = $region9
    $region8: #{tpu_custom_call.1} parent=1 // pred_region
      %s23 = ssub.s32 128, 128
      %24 = vsyncadd [#allocation6], %s23
      %s26 = sshll.u32 [#allocation5], 4
      %s27 = int_to_ptr.vmem [resolvable:$true] %s26
      %29 = dma.hbm_to_vmem [thread:$0]  %s1, 128, %s27, [#allocation6]
    $region9: #{tpu_custom_call.1} parent=1 // pred_fallthru
      _
    // Predicated region
    $region10: #{tpu_custom_call.1} parent=1 // pred_check
      _
    $region11: #{tpu_custom_call.1} parent=1 // pred_check_branch
      %31 = sbr.rel (0) target = $region13
    $region12: #{tpu_custom_call.1} parent=1 // pred_region
      %32 = dma.done [#allocation3], 128
    $region13: #{tpu_custom_call.1} parent=1 // pred_fallthru
      _
    // Predicated region
    $region14: #{tpu_custom_call.1} parent=1 // pred_check
      _
    $region15: #{tpu_custom_call.1} parent=1 // pred_check_branch
      %34 = sbr.rel (0) target = $region17
    $region16: #{tpu_custom_call.1} parent=1 // pred_region
      %35 = dma.done [#allocation6], 128
    $region17: #{tpu_custom_call.1} parent=1 // pred_fallthru
      _
    %v36 = vld [vmem:[#allocation2] sm:$0xff]
    %v37 = vld [vmem:[#allocation5] sm:$0xff]
    %v38 = vlaneseq
    %v39 = vshrl.u32 %v38, 7
    %vm40 = vcmp.gt.s32.totalorder %v39, 0
    %v41 = vsel %vm40, 1, 0
    %v42 = vcvt.s32.f32 %v41
    %v43 = vlaneseq
    %v44 = vshrl.u32 %v43, 7
    %v45 = vsub.s32 0, %v44
    %v46 = vrot.slane %v36, %v45
    %vm47 = vcmp.lt.f32.partialorder %v46, %v36
    %vm48 = vcmp.eq.f32.partialorder %v46, %v36
    %v49 = vsel %vm48, %v42, 0.0
    %v50 = vsel %vm47, 1.0, %v49
    %v51 = vadd.f32 %v50, 0.0
    %v52 = vlaneseq
    %v53 = vshrl.u32 %v52, 7
    %v54 = vsub.s32 0, %v53
    %v55 = vrot.slane %v37, %v54
    %vm56 = vcmp.lt.f32.partialorder %v55, %v37
    %vm57 = vcmp.eq.f32.partialorder %v55, %v37
    %v58 = vsel %vm57, %v42, 0.0
    %v59 = vsel %vm56, 1.0, %v58
    %v60 = vadd.f32 %v59, 0.0
    %vm61 = vcmp.gt.s32.totalorder %v39, 1
    %v62 = vsel %vm61, 1, 0
    %v63 = vcvt.s32.f32 %v62
    %v64 = vlaneseq
    %v65 = vshrl.u32 %v64, 7
    %v66 = vsub.s32 1, %v65
    %v67 = vrot.slane %v36, %v66
    %vm68 = vcmp.lt.f32.partialorder %v67, %v36
    %vm69 = vcmp.eq.f32.partialorder %v67, %v36
    %v70 = vsel %vm69, %v63, 0.0
    %v71 = vsel %vm68, 1.0, %v70
    %v72 = vadd.f32 %v51, %v71
    %v73 = vlaneseq
    %v74 = vshrl.u32 %v73, 7
    %v75 = vsub.s32 1, %v74
    %v76 = vrot.slane %v37, %v75
    %vm77 = vcmp.lt.f32.partialorder %v76, %v37
    %vm78 = vcmp.eq.f32.partialorder %v76, %v37
    %v79 = vsel %vm78, %v63, 0.0
    %v80 = vsel %vm77, 1.0, %v79
    %v81 = vadd.f32 %v60, %v80
    %vm82 = vcmp.gt.s32.totalorder %v39, 2
    %v83 = vsel %vm82, 1, 0
    %v84 = vcvt.s32.f32 %v83
    %v85 = vlaneseq
    %v86 = vshrl.u32 %v85, 7
    %v87 = vsub.s32 2, %v86
    %v88 = vrot.slane %v36, %v87
    %vm89 = vcmp.lt.f32.partialorder %v88, %v36
    %vm90 = vcmp.eq.f32.partialorder %v88, %v36
    %v91 = vsel %vm90, %v84, 0.0
    %v92 = vsel %vm89, 1.0, %v91
    %v93 = vadd.f32 %v72, %v92
    %v94 = vlaneseq
    %v95 = vshrl.u32 %v94, 7
    %v96 = vsub.s32 2, %v95
    %v97 = vrot.slane %v37, %v96
    %vm98 = vcmp.lt.f32.partialorder %v97, %v37
    %vm99 = vcmp.eq.f32.partialorder %v97, %v37
    %v100 = vsel %vm99, %v84, 0.0
    %v101 = vsel %vm98, 1.0, %v100
    %v102 = vadd.f32 %v81, %v101
    %vm103 = vcmp.gt.s32.totalorder %v39, 3
    %v104 = vsel %vm103, 1, 0
    %v105 = vcvt.s32.f32 %v104
    %v106 = vlaneseq
    %v107 = vshrl.u32 %v106, 7
    %v108 = vsub.s32 3, %v107
    %v109 = vrot.slane %v36, %v108
    %vm110 = vcmp.lt.f32.partialorder %v109, %v36
    %vm111 = vcmp.eq.f32.partialorder %v109, %v36
    %v112 = vsel %vm111, %v105, 0.0
    %v113 = vsel %vm110, 1.0, %v112
    %v114 = vadd.f32 %v93, %v113
    %v115 = vlaneseq
    %v116 = vshrl.u32 %v115, 7
    %v117 = vsub.s32 3, %v116
    %v118 = vrot.slane %v37, %v117
    %vm119 = vcmp.lt.f32.partialorder %v118, %v37
    %vm120 = vcmp.eq.f32.partialorder %v118, %v37
    %v121 = vsel %vm120, %v105, 0.0
    %v122 = vsel %vm119, 1.0, %v121
    %v123 = vadd.f32 %v102, %v122
    %vm124 = vcmp.gt.s32.totalorder %v39, 4
    %v125 = vsel %vm124, 1, 0
    %v126 = vcvt.s32.f32 %v125
    %v127 = vlaneseq
    %v128 = vshrl.u32 %v127, 7
    %v129 = vsub.s32 4, %v128
    %v130 = vrot.slane %v36, %v129
    %vm131 = vcmp.lt.f32.partialorder %v130, %v36
    %vm132 = vcmp.eq.f32.partialorder %v130, %v36
    %v133 = vsel %vm132, %v126, 0.0
    %v134 = vsel %vm131, 1.0, %v133
    %v135 = vadd.f32 %v114, %v134
    %v136 = vlaneseq
    %v137 = vshrl.u32 %v136, 7
    %v138 = vsub.s32 4, %v137
    %v139 = vrot.slane %v37, %v138
    %vm140 = vcmp.lt.f32.partialorder %v139, %v37
    %vm141 = vcmp.eq.f32.partialorder %v139, %v37
    %v142 = vsel %vm141, %v126, 0.0
    %v143 = vsel %vm140, 1.0, %v142
    %v144 = vadd.f32 %v123, %v143
    %vm145 = vcmp.gt.s32.totalorder %v39, 5
    %v146 = vsel %vm145, 1, 0
    %v147 = vcvt.s32.f32 %v146
    %v148 = vlaneseq
    %v149 = vshrl.u32 %v148, 7
    %v150 = vsub.s32 5, %v149
    %v151 = vrot.slane %v36, %v150
    %vm152 = vcmp.lt.f32.partialorder %v151, %v36
    %vm153 = vcmp.eq.f32.partialorder %v151, %v36
    %v154 = vsel %vm153, %v147, 0.0
    %v155 = vsel %vm152, 1.0, %v154
    %v156 = vadd.f32 %v135, %v155
    %v157 = vlaneseq
    %v158 = vshrl.u32 %v157, 7
    %v159 = vsub.s32 5, %v158
    %v160 = vrot.slane %v37, %v159
    %vm161 = vcmp.lt.f32.partialorder %v160, %v37
    %vm162 = vcmp.eq.f32.partialorder %v160, %v37
    %v163 = vsel %vm162, %v147, 0.0
    %v164 = vsel %vm161, 1.0, %v163
    %v165 = vadd.f32 %v144, %v164
    %vm166 = vcmp.gt.s32.totalorder %v39, 6
    %v167 = vsel %vm166, 1, 0
    %v168 = vcvt.s32.f32 %v167
    %v169 = vlaneseq
    %v170 = vshrl.u32 %v169, 7
    %v171 = vsub.s32 6, %v170
    %v172 = vrot.slane %v36, %v171
    %vm173 = vcmp.lt.f32.partialorder %v172, %v36
    %vm174 = vcmp.eq.f32.partialorder %v172, %v36
    %v175 = vsel %vm174, %v168, 0.0
    %v176 = vsel %vm173, 1.0, %v175
    %v177 = vadd.f32 %v156, %v176
    %v178 = vlaneseq
    %v179 = vshrl.u32 %v178, 7
    %v180 = vsub.s32 6, %v179
    %v181 = vrot.slane %v37, %v180
    %vm182 = vcmp.lt.f32.partialorder %v181, %v37
    %vm183 = vcmp.eq.f32.partialorder %v181, %v37
    %v184 = vsel %vm183, %v168, 0.0
    %v185 = vsel %vm182, 1.0, %v184
    %v186 = vadd.f32 %v165, %v185
    %vm187 = vcmp.gt.s32.totalorder %v39, 7
    %v188 = vsel %vm187, 1, 0
    %v189 = vcvt.s32.f32 %v188
    %v190 = vlaneseq
    %v191 = vshrl.u32 %v190, 7
    %v192 = vsub.s32 7, %v191
    %v193 = vrot.slane %v36, %v192
    %vm194 = vcmp.lt.f32.partialorder %v193, %v36
    %vm195 = vcmp.eq.f32.partialorder %v193, %v36
    %v196 = vsel %vm195, %v189, 0.0
    %v197 = vsel %vm194, 1.0, %v196
    %v198 = vadd.f32 %v177, %v197
    %v199 = vlaneseq
    %v200 = vshrl.u32 %v199, 7
    %v201 = vsub.s32 7, %v200
    %v202 = vrot.slane %v37, %v201
    %vm203 = vcmp.lt.f32.partialorder %v202, %v37
    %vm204 = vcmp.eq.f32.partialorder %v202, %v37
    %v205 = vsel %vm204, %v189, 0.0
    %v206 = vsel %vm203, 1.0, %v205
    %v207 = vadd.f32 %v186, %v206
    %v208 = vlaneseq
    %v209 = vshrl.u32 %v208, 7
    %v210 = vsub.s32 0, %v209
    %v211 = vrot.slane %v207, %v210
    %vm212 = vcmp.eq.f32.partialorder %v211, %v198
    %v213 = vsel %vm212, %v55, 0.0
    %v214 = vlaneseq
    %v215 = vshrl.u32 %v214, 7
    %v216 = vsub.s32 1, %v215
    %v217 = vrot.slane %v207, %v216
    %vm218 = vcmp.eq.f32.partialorder %v217, %v198
    %v219 = vsel %vm218, %v76, %v213
    %v220 = vlaneseq
    %v221 = vshrl.u32 %v220, 7
    %v222 = vsub.s32 2, %v221
    %v223 = vrot.slane %v207, %v222
    %vm224 = vcmp.eq.f32.partialorder %v223, %v198
    %v225 = vsel %vm224, %v97, %v219
    %v226 = vlaneseq
    %v227 = vshrl.u32 %v226, 7
    %v228 = vsub.s32 3, %v227
    %v229 = vrot.slane %v207, %v228
    %vm230 = vcmp.eq.f32.partialorder %v229, %v198
    %v231 = vsel %vm230, %v118, %v225
    %v232 = vlaneseq
    %v233 = vshrl.u32 %v232, 7
    %v234 = vsub.s32 4, %v233
    %v235 = vrot.slane %v207, %v234
    %vm236 = vcmp.eq.f32.partialorder %v235, %v198
    %v237 = vsel %vm236, %v139, %v231
    %v238 = vlaneseq
    %v239 = vshrl.u32 %v238, 7
    %v240 = vsub.s32 5, %v239
    %v241 = vrot.slane %v207, %v240
    %vm242 = vcmp.eq.f32.partialorder %v241, %v198
    %v243 = vsel %vm242, %v160, %v237
    %v244 = vlaneseq
    %v245 = vshrl.u32 %v244, 7
    %v246 = vsub.s32 6, %v245
    %v247 = vrot.slane %v207, %v246
    %vm248 = vcmp.eq.f32.partialorder %v247, %v198
    %v249 = vsel %vm248, %v181, %v243
    %v250 = vlaneseq
    %v251 = vshrl.u32 %v250, 7
    %v252 = vsub.s32 7, %v251
    %v253 = vrot.slane %v207, %v252
    %vm254 = vcmp.eq.f32.partialorder %v253, %v198
    %v255 = vsel %vm254, %v202, %v249
    %v256 = vsub.f32 %v36, %v255
    %v257 = vmul.f32 %v256, %v256
    %v258 = vrot.slane %v257, 4
    %v259 = vadd.f32 %v257, %v258
    %v260 = vrot.slane %v259, 2
    %v261 = vadd.f32 %v259, %v260
    %v262 = vrot.slane %v261, 1
    %v263 = vadd.f32 %v261, %v262
    %264 = vst [vmem:[#allocation7] sm:$0xff] %v263
    // Predicated region
    $region18: #{tpu_custom_call.1} parent=1 // pred_check
      _
    $region19: #{tpu_custom_call.1} parent=1 // pred_check_branch
      %266 = sbr.rel (0) target = $region21
    $region20: #{tpu_custom_call.1} parent=1 // pred_region
      %s268 = ssub.s32 128, 128
      %269 = vsyncadd [#allocation4], %s268
      %s271 = sshll.u32 [#allocation7], 4
      %s272 = int_to_ptr.vmem [resolvable:$true] %s271
      %274 = dma.vmem_to_hbm [thread:$0]  %s272, 128, %s2, [#allocation4]
    $region21: #{tpu_custom_call.1} parent=1 // pred_fallthru
      _
    // Predicated region
    $region22: #{tpu_custom_call.1} parent=1 // pred_check
      _
    $region23: #{tpu_custom_call.1} parent=1 // pred_check_branch
      %276 = sbr.rel (0) target = $region25
    $region24: #{tpu_custom_call.1} parent=1 // pred_region
      %277 = dma.done [#allocation4], 128
    $region25: #{tpu_custom_call.1} parent=1 // pred_fallthru
      _
    %278 = vsyncpa [#allocation3], 1
    %279 = vsyncpa [#allocation6], 1
    %280 = vsyncpa [#allocation4], 1

</llo_original>
